<compile_context>
chip_gen: v7x
topology: tpu7x:2x2x1
jax: 0.10.0
libtpu: 0.0.40
codegen_flags: <defaults>
</compile_context>

<pallas_src>
import functools
import math

import jax
import jax.numpy as jnp
from jax.experimental import pallas as pl
from jax.experimental.pallas import tpu as pltpu


# --------------------------------------------------------------------------- kernels
def _pe_add_kernel(x_ref, pe_ref, o_ref, *, batch):
    # x_ref: (block_s*B, D)   pe_ref: (block_s, D)   o_ref: (block_s*B, D)
    pe_b = jnp.repeat(pe_ref[...], batch, axis=0)          # broadcast pe rows over batch
    o_ref[...] = (x_ref[...] + pe_b).astype(o_ref.dtype)


def _pe_add_dropout_kernel(x_ref, pe_ref, bits_ref, o_ref, *, batch, p):
    # x_ref/bits_ref/o_ref: (block_s*B, D)   pe_ref: (block_s, D)
    pe_b = jnp.repeat(pe_ref[...], batch, axis=0)
    y = x_ref[...] + pe_b
    # Inverted dropout: drop iff bits < round(p * 2^32); scale kept values by 1/(1-p).
    threshold = jnp.uint32(min(int(round(p * (1 << 32))), (1 << 32) - 1))
    keep = bits_ref[...] >= threshold
    scale = jnp.asarray(1.0 / (1.0 - p), dtype=y.dtype)
    zero = jnp.asarray(0.0, dtype=y.dtype)
    o_ref[...] = (y * jnp.where(keep, scale, zero)).astype(o_ref.dtype)


# --------------------------------------------------------------------------- pe table
def make_positional_encoding_table(max_len, d_model):
    """Replicates the pe buffer from PositionalEncoding.__init__ -> (max_len, 1, d_model)."""
    position = jnp.arange(max_len, dtype=jnp.float32)[:, None]                    # (L, 1)
    div_term = jnp.exp(
        jnp.arange(0, d_model, 2, dtype=jnp.float32) * (-math.log(10000.0) / d_model)
    )                                                                              # (ceil(D/2),)
    pe = jnp.zeros((max_len, d_model), jnp.float32)
    pe = pe.at[:, 0::2].set(jnp.sin(position * div_term))
    pe = pe.at[:, 1::2].set(jnp.cos(position * div_term[: d_model // 2]))          # odd-D safe
    return pe[:, None, :]                                                          # (L, 1, D)


# --------------------------------------------------------------------------- wrapper
def _choose_block_s(S, B, D, itemsize, target_bytes=1 << 20):
    """~1 MiB x-blocks, multiple of 8 seq rows, dividing S (fits v5e/v7x scoped VMEM easily)."""
    bytes_per_pos = max(1, B * D * itemsize)
    bs = min(S, max(1, target_bytes // bytes_per_pos))
    bs = (bs // 8) * 8
    while bs >= 8 and S % bs != 0:
        bs -= 8
    return bs if bs >= 8 else S


def positional_encoding_forward(x, pe, *, p=0.2, training=False, rng_key=None, block_s=None):
    """x: (S, B, D);  pe: (max_len, 1, D) from make_positional_encoding_table."""
    S, B, D = x.shape
    x2 = x.reshape(S * B, D)          # free reshape of contiguous seq-first layout
    pe2 = pe[:S, 0, :]                # (S, D) — same slicing as self.pe[:x.size(0), :]

    if block_s is None:
        block_s = _choose_block_s(S, B, D, x.dtype.itemsize)
    grid = (S // block_s,)

    x_spec = pl.BlockSpec((block_s * B, D), lambda i: (i, 0))
    pe_spec = pl.BlockSpec((block_s, D), lambda i: (i, 0))
    out_spec = pl.BlockSpec((block_s * B, D), lambda i: (i, 0))
    compiler_params = pltpu.CompilerParams(dimension_semantics=("parallel",))
    out_shape = jax.ShapeDtypeStruct((S * B, D), x.dtype)

    if training and p > 0.0:
        if rng_key is None:
            rng_key = jax.random.PRNGKey(0)
        bits = jax.random.bits(rng_key, (S * B, D), dtype=jnp.uint32)
        kernel = functools.partial(_pe_add_dropout_kernel, batch=B, p=float(p))
        out2 = pl.pallas_call(
            kernel,
            out_shape=out_shape,
            grid=grid,
            in_specs=[x_spec, pe_spec, x_spec],   # bits share x's lane-dense blocking
            out_specs=out_spec,
            compiler_params=compiler_params,
        )(x2, pe2, bits)
    else:
        kernel = functools.partial(_pe_add_kernel, batch=B)
        out2 = pl.pallas_call(
            kernel,
            out_shape=out_shape,
            grid=grid,
            in_specs=[x_spec, pe_spec],
            out_specs=out_spec,
            compiler_params=compiler_params,
        )(x2, pe2)

    return out2.reshape(S, B, D)


# --------------------------------------------------------------------------- demo / checks
if __name__ == "__main__":
    S, B, D = 8, 2, 32
    MAX_LEN = 5000
    P_DROP = 0.2

    key = jax.random.PRNGKey(0)
    x_key, drop_key = jax.random.split(key)
    x = jax.random.normal(x_key, (S, B, D), dtype=jnp.float32)
    pe = make_positional_encoding_table(MAX_LEN, D)

    # --- eval-mode forward (dropout = identity), check against reference ---
    y_eval = jax.block_until_ready(
        positional_encoding_forward(x, pe, p=P_DROP, training=False)
    )
    ref = x + pe[:S]
    assert y_eval.shape == (S, B, D)
    assert jnp.allclose(y_eval, ref, atol=1e-5, rtol=1e-5), "eval-mode mismatch"

    # --- training-mode forward (inverted dropout) ---
    y_train = jax.block_until_ready(
        positional_encoding_forward(x, pe, p=P_DROP, training=True, rng_key=drop_key)
    )
    scaled = ref / (1.0 - P_DROP)
    # every element is either dropped (0) or the scaled kept value
    ok = jnp.logical_or(
        jnp.isclose(y_train, 0.0, atol=1e-6),
        jnp.isclose(y_train, scaled, atol=1e-4, rtol=1e-4),
    )
    assert bool(jnp.all(ok)), "training-mode dropout mismatch"

    print("KERNEL_OK")
</pallas_src>

<mosaic_0001>
module attributes {stable_mosaic.version = 11 : i64} {
  func.func @_pe_add_kernel(%arg0: i32, %arg1: memref<16x32xf32, #tpu.memory_space<vmem>>, %arg2: memref<8x32xf32, #tpu.memory_space<vmem>>, %arg3: memref<16x32xf32, #tpu.memory_space<vmem>>) attributes {dimension_semantics = [#tpu.dimension_semantics<parallel>], iteration_bounds = array<i64: 1>, scalar_prefetch = 0 : i64, scratch_operands = 0 : i64, tpu.core_type = #tpu.core_type<tc>, window_params = [{transform_indices = @transform_0, window_bounds = array<i64: 16, 32>}, {transform_indices = @transform_1, window_bounds = array<i64: 8, 32>}, {transform_indices = @transform_2, window_bounds = array<i64: 16, 32>}]} {
    %c0 = arith.constant 0 : index
    %c0_0 = arith.constant 0 : index
    %0 = vector.load %arg2[%c0, %c0_0] : memref<8x32xf32, #tpu.memory_space<vmem>>, vector<8x32xf32>
    %1 = vector.shape_cast %0 : vector<8x32xf32> to vector<8x1x32xf32>
    %2 = vector.broadcast %1 : vector<8x1x32xf32> to vector<8x2x32xf32>
    %3 = vector.shape_cast %2 : vector<8x2x32xf32> to vector<16x32xf32>
    %c0_1 = arith.constant 0 : index
    %c0_2 = arith.constant 0 : index
    %4 = vector.load %arg1[%c0_1, %c0_2] : memref<16x32xf32, #tpu.memory_space<vmem>>, vector<16x32xf32>
    %5 = arith.addf %4, %3 : vector<16x32xf32>
    %c0_3 = arith.constant 0 : index
    %c0_4 = arith.constant 0 : index
    %6 = vector.load %arg3[%c0_3, %c0_4] : memref<16x32xf32, #tpu.memory_space<vmem>>, vector<16x32xf32>
    tpu.vector_store %arg3[%c0_3, %c0_4], %5 {strides = array<i32>} : memref<16x32xf32, #tpu.memory_space<vmem>>, vector<16x32xf32>,
    return
  }
  func.func @transform_0(%arg0: i32) -> (i32, i32) {
    %c0_i32 = arith.constant 0 : i32
    %c0_i32_0 = arith.constant 0 : i32
    return %arg0, %c0_i32 : i32, i32
  }
  func.func @transform_1(%arg0: i32) -> (i32, i32) {
    %c0_i32 = arith.constant 0 : i32
    %c0_i32_0 = arith.constant 0 : i32
    return %arg0, %c0_i32 : i32, i32
  }
  func.func @transform_2(%arg0: i32) -> (i32, i32) {
    %c0_i32 = arith.constant 0 : i32
    %c0_i32_0 = arith.constant 0 : i32
    return %arg0, %c0_i32 : i32, i32
  }
}

</mosaic_0001>

<llo_original>
// kernel: tpu_custom_call.1
$region0: #{tpu_custom_call.1}
  #allocation0 [shape = 'u32[]', space=smem, size = 0x4, offset = 0x4, fixed_abs, tag = 'smem constant byte address 0x4 - core index']
  #allocation1 [shape = 'u32[144,128]{1,0:T(1,128)}', space=vmem, size = 0x12000, scoped, tag = 'internal scratch']
  %s0 = inlined_call_operand.hbm [shape: f32[16,32], index: 0, kind: input, shape index: {}]
  %s1 = inlined_call_operand.hbm [shape: f32[8,32], index: 1, kind: input, shape index: {}]
  %s2 = inlined_call_operand.hbm [shape: f32[16,32], index: 2, kind: output, shape index: {}]
  %s3 = sld [smem:[#allocation0]]
  $region26: #{tpu_custom_call.1} parent=0
    _
  %s5 = ssub.s32 1, %s3
  %s6 = scalar_select 0, %s5, %s3
  $region1: #{tpu_custom_call.1} parent=0
    #allocation2 [shape = 'u8[8192]{0}', space=vmem, size = 0x2000, scoped, tag = 'input window, operand 0, single buffered']
    #allocation3 [shape = 's32[1]{0}', space=sflag, size = 0x4, scoped, tag = 'scoped memory for tpu_custom_call.1']
    #allocation4 [shape = 's32[1]{0}', space=sflag, size = 0x4, scoped, tag = 'scoped memory for tpu_custom_call.1']
    #allocation5 [shape = 'u8[4096]{0}', space=vmem, size = 0x1000, scoped, tag = 'input window, operand 1, single buffered']
    #allocation6 [shape = 's32[1]{0}', space=sflag, size = 0x4, scoped, tag = 'scoped memory for tpu_custom_call.1']
    #allocation7 [shape = 'u8[8192]{0}', space=vmem, size = 0x2000, scoped, tag = 'output window, operand 0, single buffered']
    %7 = vsyncpa [#allocation3], 0
    %8 = vsyncpa [#allocation6], 0
    %9 = vsyncpa [#allocation4], 0
    // Predicated region
    $region2: #{tpu_custom_call.1} parent=1 // pred_check
      _
    $region3: #{tpu_custom_call.1} parent=1 // pred_check_branch
      %11 = sbr.rel (0) target = $region5
    $region4: #{tpu_custom_call.1} parent=1 // pred_region
      %s13 = ssub.s32 256, 256
      %14 = vsyncadd [#allocation3], %s13
      %s15 = sshll.u32 [#allocation2], 4
      %s16 = int_to_ptr.vmem [resolvable:$true] %s15
      %21 = dma.hbm_to_vmem [thread:$0]  %s0, 256, %s16, [#allocation3], 128, 128, 8
    $region5: #{tpu_custom_call.1} parent=1 // pred_fallthru
      _
    // Predicated region
    $region6: #{tpu_custom_call.1} parent=1 // pred_check
      _
    $region7: #{tpu_custom_call.1} parent=1 // pred_check_branch
      %23 = sbr.rel (0) target = $region9
    $region8: #{tpu_custom_call.1} parent=1 // pred_region
      %s25 = ssub.s32 128, 128
      %26 = vsyncadd [#allocation6], %s25
      %s28 = sshll.u32 [#allocation5], 4
      %s29 = int_to_ptr.vmem [resolvable:$true] %s28
      %31 = dma.hbm_to_vmem [thread:$0]  %s1, 128, %s29, [#allocation6]
    $region9: #{tpu_custom_call.1} parent=1 // pred_fallthru
      _
    // Predicated region
    $region10: #{tpu_custom_call.1} parent=1 // pred_check
      _
    $region11: #{tpu_custom_call.1} parent=1 // pred_check_branch
      %33 = sbr.rel (0) target = $region13
    $region12: #{tpu_custom_call.1} parent=1 // pred_region
      %34 = dma.done [#allocation3], 256
    $region13: #{tpu_custom_call.1} parent=1 // pred_fallthru
      _
    // Predicated region
    $region14: #{tpu_custom_call.1} parent=1 // pred_check
      _
    $region15: #{tpu_custom_call.1} parent=1 // pred_check_branch
      %36 = sbr.rel (0) target = $region17
    $region16: #{tpu_custom_call.1} parent=1 // pred_region
      %37 = dma.done [#allocation6], 128
    $region17: #{tpu_custom_call.1} parent=1 // pred_fallthru
      _
    %v38 = vld [vmem:[#allocation5] sm:$0xff]
    %v40 = vcombine.high %v38, %v38
    %v42 = vunpack.c.l.s4 1966171168
    %v43 = vunpack.c.0.s8 %v42
    %v44 = vlaneseq
    %v45 = vshrl.u32 %v44, 7
    %v46 = vsub.s32 %v43, %v45
    %v47 = vrot.slane %v38, %v46
    %v49 = vunpack.c.l.s4 1966171168
    %v50 = vunpack.c.0.s8 %v49
    %v51 = vlaneseq
    %v52 = vshrl.u32 %v51, 7
    %v53 = vsub.s32 %v50, %v52
    %v54 = vrot.slane %v40, %v53
    %v55 = vcombine.high %v47, %v47
    %v56 = vcombine.high %v54, %v54
    %v58 = vunpack.c.l.s4 1966171168
    %v59 = vunpack.c.0.s8 %v58
    %v60 = vlaneseq
    %v61 = vshrl.u32 %v60, 7
    %v62 = vsub.s32 %v59, %v61
    %v63 = vrot.slane %v47, %v62
    %v65 = vunpack.c.l.s4 1966171168
    %v66 = vunpack.c.0.s8 %v65
    %v67 = vlaneseq
    %v68 = vshrl.u32 %v67, 7
    %v69 = vsub.s32 %v66, %v68
    %v70 = vrot.slane %v54, %v69
    %v72 = vunpack.c.l.s4 1966171168
    %v73 = vunpack.c.0.s8 %v72
    %v74 = vlaneseq
    %v75 = vshrl.u32 %v74, 7
    %v76 = vsub.s32 %v73, %v75
    %v77 = vrot.slane %v55, %v76
    %v79 = vunpack.c.l.s4 1966171168
    %v80 = vunpack.c.0.s8 %v79
    %v81 = vlaneseq
    %v82 = vshrl.u32 %v81, 7
    %v83 = vsub.s32 %v80, %v82
    %v84 = vrot.slane %v56, %v83
    %v85 = vcombine.high %v63, %v63
    %v86 = vcombine.high %v70, %v70
    %v87 = vcombine.high %v77, %v77
    %v88 = vcombine.high %v84, %v84
    %v89 = vlaneseq
    %v90 = vshrl.u32 %v89, 7
    %v91 = vsub.s32 0, %v90
    %v92 = vrot.slane %v63, %v91
    %v93 = vlaneseq
    %v94 = vshrl.u32 %v93, 7
    %v95 = vsub.s32 0, %v94
    %v96 = vrot.slane %v77, %v95
    %v97 = vlaneseq
    %v98 = vshrl.u32 %v97, 7
    %v99 = vsub.s32 0, %v98
    %v100 = vrot.slane %v85, %v99
    %v101 = vlaneseq
    %v102 = vshrl.u32 %v101, 7
    %v103 = vsub.s32 0, %v102
    %v104 = vrot.slane %v87, %v103
    %v105 = vlaneseq
    %v106 = vshrl.u32 %v105, 7
    %v107 = vsub.s32 0, %v106
    %v108 = vrot.slane %v70, %v107
    %v109 = vlaneseq
    %v110 = vshrl.u32 %v109, 7
    %v111 = vsub.s32 0, %v110
    %v112 = vrot.slane %v84, %v111
    %v113 = vlaneseq
    %v114 = vshrl.u32 %v113, 7
    %v115 = vsub.s32 0, %v114
    %v116 = vrot.slane %v86, %v115
    %v117 = vlaneseq
    %v118 = vshrl.u32 %v117, 7
    %v119 = vsub.s32 0, %v118
    %v120 = vrot.slane %v88, %v119
    %v121 = vld [vmem:[#allocation2] sm:$0xff]
    %v122 = vld [vmem:[#allocation2 + $0x8] sm:$0xff]
    %v123 = vcombine.low %v92, %v96
    %v124 = vcombine.low %v100, %v104
    %v126 = vunpack.c.l.s4 1983009808
    %v127 = vunpack.c.0.s8 %v126
    %v128 = vlaneseq
    %v129 = vshrl.u32 %v128, 7
    %v130 = vsub.s32 %v127, %v129
    %v131 = vrot.slane %v123, %v130
    %v133 = vunpack.c.l.s4 1983009808
    %v134 = vunpack.c.0.s8 %v133
    %v135 = vlaneseq
    %v136 = vshrl.u32 %v135, 7
    %v137 = vsub.s32 %v134, %v136
    %v138 = vrot.slane %v124, %v137
    %v139 = vcombine.low %v131, %v138
    %v140 = vcombine.low %v108, %v112
    %v141 = vcombine.low %v116, %v120
    %v143 = vunpack.c.l.s4 1983009808
    %v144 = vunpack.c.0.s8 %v143
    %v145 = vlaneseq
    %v146 = vshrl.u32 %v145, 7
    %v147 = vsub.s32 %v144, %v146
    %v148 = vrot.slane %v140, %v147
    %v150 = vunpack.c.l.s4 1983009808
    %v151 = vunpack.c.0.s8 %v150
    %v152 = vlaneseq
    %v153 = vshrl.u32 %v152, 7
    %v154 = vsub.s32 %v151, %v153
    %v155 = vrot.slane %v141, %v154
    %v156 = vcombine.low %v148, %v155
    %v159 = vadd.f32 %v121, %v139
    %v160 = vadd.f32 %v122, %v156
    %vm161 = vcmask 261120
    %162 = vst.msk [vmem:[#allocation7] sm:$0xff] %vm161, %v159
    %163 = vst.msk [vmem:[#allocation7 + $0x8] sm:$0xff] %vm161, %v160
    // Predicated region
    $region18: #{tpu_custom_call.1} parent=1 // pred_check
      _
    $region19: #{tpu_custom_call.1} parent=1 // pred_check_branch
      %165 = sbr.rel (0) target = $region21
    $region20: #{tpu_custom_call.1} parent=1 // pred_region
      %s167 = ssub.s32 256, 256
      %168 = vsyncadd [#allocation4], %s167
      %s169 = sshll.u32 [#allocation7], 4
      %s170 = int_to_ptr.vmem [resolvable:$true] %s169
      %175 = dma.vmem_to_hbm [thread:$0]  %s170, 256, %s2, [#allocation4], 128, 128, 8
    $region21: #{tpu_custom_call.1} parent=1 // pred_fallthru
      _
    // Predicated region
    $region22: #{tpu_custom_call.1} parent=1 // pred_check
      _
    $region23: #{tpu_custom_call.1} parent=1 // pred_check_branch
      %177 = sbr.rel (0) target = $region25
    $region24: #{tpu_custom_call.1} parent=1 // pred_region
      %178 = dma.done [#allocation4], 256
    $region25: #{tpu_custom_call.1} parent=1 // pred_fallthru
      _
    %179 = vsyncpa [#allocation3], 1
    %180 = vsyncpa [#allocation6], 1
    %181 = vsyncpa [#allocation4], 1

</llo_original>
